<compile_context>
chip_gen: v6e
topology: v6e:2x2x1
jax: 0.10.0
libtpu: 0.0.40
codegen_flags: <defaults>
</compile_context>

<pallas_src>
import jax
import jax.numpy as jnp
from jax import lax
from jax.experimental import pallas as pl
from jax.experimental.pallas import tpu as pltpu


# ----------------------------------------------------------------------------
# Pass 1: Gram matrix (HW-tiled reduction) + softmax + gamma fold
# ----------------------------------------------------------------------------
def _gram_softmax_kernel(gamma_ref, x_ref, attn_ref):
    # gamma_ref: (1,) f32 scalar in SMEM
    # x_ref    : (C, tHW) tile of X = x[b].reshape(C, H*W), native dtype
    # attn_ref : (C, C) f32 output block, resident across the HW-tile grid axis
    k = pl.program_id(1)

    @pl.when(k == 0)
    def _():
        attn_ref[...] = jnp.zeros_like(attn_ref)

    x = x_ref[...]  # native dtype straight into the MXU (bf16 fast path on v6e/v7x)
    # E += X_tile @ X_tile^T : contract the lane (HW) dim of both operands
    # (trans-b matmul — no XLU transpose of the big (C, tHW) tile per step).
    attn_ref[...] += lax.dot_general(
        x, x,
        dimension_numbers=(((1,), (1,)), ((), ())),
        preferred_element_type=jnp.float32,
    )

    @pl.when(k == pl.num_programs(1) - 1)
    def _():
        energy = attn_ref[...]
        # softmax(rowmax(E) - E) == exp(rowmin(E) - E) / sum(exp(rowmin(E) - E)):
        # one row reduction, exponent <= 0 (stable), matches PyTorch exactly.
        p = jnp.exp(jnp.min(energy, axis=-1, keepdims=True) - energy)
        attn = p / jnp.sum(p, axis=-1, keepdims=True)
        # Fold gamma into the small (C, C) matrix instead of the (C, HW) product.
        attn_ref[...] = gamma_ref[0] * attn


# ----------------------------------------------------------------------------
# Pass 2: out_tile = (gamma * A) @ x_tile + x_tile   (each HW tile independent)
# ----------------------------------------------------------------------------
def _apply_kernel(attn_ref, x_ref, o_ref):
    # attn_ref: (C, C) f32 (gamma already folded); x_ref / o_ref: (C, tHW) tiles
    x = x_ref[...]
    a = attn_ref[...].astype(x.dtype)  # no-op for f32; keeps bf16 inputs on the bf16 MXU path
    out = lax.dot_general(
        a, x,
        dimension_numbers=(((1,), (0,)), ((), ())),
        preferred_element_type=jnp.float32,
    )
    o_ref[...] = (out + x.astype(jnp.float32)).astype(o_ref.dtype)


# ----------------------------------------------------------------------------
# VMEM-aware tiling helpers
# ----------------------------------------------------------------------------
def _vmem_limit_bytes():
    cap = 64 * 1024 * 1024  # conservative fallback = v7x physical per-TC VMEM
    try:
        info = pltpu.get_tpu_info()
        cap = int(getattr(info, "vmem_capacity_bytes", cap))
    except Exception:
        pass
    # Leave headroom for Mosaic internal scratch / semaphores / double buffers:
    # ~48 MiB on v7x (64 MiB physical), ~96 MiB on v5e/v6e (128 MiB physical).
    return min(cap * 3 // 4, 100 * 1024 * 1024)


def _pick_hw_tile(HW, C, elt_bytes, budget_bytes):
    """Largest lane-aligned divisor of HW whose per-step footprint fits the budget."""
    def footprint(t):
        # Apply-pass per-step footprint (the larger of the two passes):
        # double-buffered x-in + out blocks, f32 matmul result, resident (C,C) attn.
        return 4 * C * t * elt_bytes + 4 * C * t + 8 * C * C

    lane = [d for d in range(128, HW + 1, 128) if HW % d == 0]
    if not lane:
        # No lane-aligned divisor: the block's last dim must span the full HW.
        return HW
    fitting = [d for d in lane if footprint(d) <= budget_bytes]
    if not fitting:
        return lane[0]  # smallest aligned tile we can offer
    multi = [d for d in fitting if HW // d >= 2]  # keep >=2 HW steps for pipelining
    return max(multi) if multi else max(fitting)


# ----------------------------------------------------------------------------
# Wrapper
# ----------------------------------------------------------------------------
def dam_channel_forward(x_nchw, gamma):
    """x_nchw: (N, C, H, W); gamma: scalar / (1,) parameter. Returns (N, C, H, W)."""
    N, C, H, W = x_nchw.shape
    HW = H * W
    x3d = x_nchw.reshape(N, C, HW)                      # free reshape, no transpose
    gamma1 = jnp.asarray(gamma, jnp.float32).reshape(1)
    elt = jnp.dtype(x_nchw.dtype).itemsize

    vmem_limit = _vmem_limit_bytes()
    thw = _pick_hw_tile(HW, C, elt, int(vmem_limit * 0.8))
    n_hw = HW // thw

    # ---- Pass 1: per-batch (C, C) attention matrix (gamma folded), f32 ----
    attn = pl.pallas_call(
        _gram_softmax_kernel,
        out_shape=jax.ShapeDtypeStruct((N, C, C), jnp.float32),
        grid=(N, n_hw),
        in_specs=[
            pl.BlockSpec(memory_space=pltpu.MemorySpace.SMEM),          # gamma
            pl.BlockSpec((None, C, thw), lambda b, k: (b, 0, k)),       # x tile
        ],
        out_specs=pl.BlockSpec((None, C, C), lambda b, k: (b, 0, 0)),   # resident accumulator
        compiler_params=pltpu.CompilerParams(
            dimension_semantics=("parallel", "arbitrary"),
            vmem_limit_bytes=vmem_limit,
        ),
        cost_estimate=pl.CostEstimate(
            flops=2 * N * C * C * HW,
            transcendentals=N * C * C,
            bytes_accessed=N * C * HW * elt + N * C * C * 4,
        ),
    )(gamma1, x3d)

    # ---- Pass 2: out = (gamma*A) @ X + X, HW-tiled, lane-dense stores ----
    out = pl.pallas_call(
        _apply_kernel,
        out_shape=jax.ShapeDtypeStruct((N, C, HW), x_nchw.dtype),
        grid=(N, n_hw),
        in_specs=[
            pl.BlockSpec((None, C, C), lambda b, k: (b, 0, 0)),         # attn (held across k)
            pl.BlockSpec((None, C, thw), lambda b, k: (b, 0, k)),       # x tile
        ],
        out_specs=pl.BlockSpec((None, C, thw), lambda b, k: (b, 0, k)),
        compiler_params=pltpu.CompilerParams(
            dimension_semantics=("parallel", "parallel"),
            vmem_limit_bytes=vmem_limit,
        ),
        cost_estimate=pl.CostEstimate(
            flops=2 * N * C * C * HW,
            transcendentals=0,
            bytes_accessed=2 * N * C * HW * elt + N * C * C * 4,
        ),
    )(attn, x3d)

    return out.reshape(N, C, H, W)


# ----------------------------------------------------------------------------
# Pure-JAX reference (mirrors the PyTorch module exactly)
# ----------------------------------------------------------------------------
def dam_channel_reference(x_nchw, gamma):
    N, C, H, W = x_nchw.shape
    x = x_nchw.reshape(N, C, H * W).astype(jnp.float32)
    energy = jnp.einsum("bcx,bdx->bcd", x, x)
    e_new = jnp.max(energy, axis=-1, keepdims=True) - energy
    attn = jax.nn.softmax(e_new, axis=-1)
    out = jnp.einsum("bcd,bdx->bcx", attn, x)
    out = jnp.asarray(gamma, jnp.float32).reshape(()) * out + x
    return out.reshape(N, C, H, W).astype(x_nchw.dtype)


# ----------------------------------------------------------------------------
if __name__ == "__main__":
    key = jax.random.PRNGKey(0)

    # Small deterministic config consistent with the module: N*C*H*W input.
    N, C, H, W = 2, 4, 16, 16
    x = jax.random.normal(key, (N, C, H, W), jnp.float32)

    # nn.Parameter(torch.zeros(1)) in the module; nonzero here so the attention
    # path is actually exercised (gamma=0 would make out == x trivially).
    gamma = jnp.array([0.5], jnp.float32)

    out = jax.block_until_ready(dam_channel_forward(x, gamma))
    assert out.shape == (N, C, H, W), out.shape
    assert bool(jnp.all(jnp.isfinite(out)))

    ref = dam_channel_reference(x, gamma)
    err = float(jnp.max(jnp.abs(out - ref)))
    assert jnp.allclose(out, ref, rtol=1e-3, atol=1e-3), err

    # gamma = 0 identity path (matches the module's initial state).
    out0 = jax.block_until_ready(dam_channel_forward(x, jnp.zeros((1,), jnp.float32)))
    assert jnp.allclose(out0, x, rtol=1e-6, atol=1e-6)

    print("KERNEL_OK")
</pallas_src>

<mosaic_0001>
module attributes {stable_mosaic.version = 11 : i64} {
  func.func @_gram_softmax_kernel(%arg0: i32, %arg1: i32, %arg2: memref<1xf32, #tpu.memory_space<smem>>, %arg3: memref<1x4x128xf32, #tpu.memory_space<vmem>>, %arg4: memref<1x4x4xf32, #tpu.memory_space<vmem>>) attributes {dimension_semantics = [#tpu.dimension_semantics<parallel>, #tpu.dimension_semantics<arbitrary>], iteration_bounds = array<i64: 2, 2>, scalar_prefetch = 0 : i64, scratch_operands = 0 : i64, tpu.core_type = #tpu.core_type<tc>, window_params = [{transform_indices = @transform_0, window_bounds = array<i64: 1>}, {transform_indices = @transform_1, window_bounds = array<i64: 1, 4, 128>}, {transform_indices = @transform_2, window_bounds = array<i64: 1, 4, 4>}]} {
    %c0_i32 = arith.constant 0 : i32
    %0 = arith.cmpi eq, %arg1, %c0_i32 : i32
    %1 = arith.extui %0 : i1 to i32
    %c0_i32_0 = arith.constant 0 : i32
    %2 = arith.cmpi ne, %1, %c0_i32_0 : i32
    scf.if %2 {
      %cst_10 = arith.constant 0.000000e+00 : f32
      %15 = vector.broadcast %cst_10 : f32 to vector<4x4xf32>
      %c0_11 = arith.constant 0 : index
      %c0_12 = arith.constant 0 : index
      %c0_13 = arith.constant 0 : index
      %16 = vector.load %arg4[%c0_11, %c0_12, %c0_13] : memref<1x4x4xf32, #tpu.memory_space<vmem>>, vector<1x4x4xf32>
      %17 = vector.shape_cast %16 : vector<1x4x4xf32> to vector<4x4xf32>
      %18 = vector.shape_cast %15 : vector<4x4xf32> to vector<1x4x4xf32>
      tpu.vector_store %arg4[%c0_11, %c0_12, %c0_13], %18 {strides = array<i32>} : memref<1x4x4xf32, #tpu.memory_space<vmem>>, vector<1x4x4xf32>,
    } else {
    }
    %c0 = arith.constant 0 : index
    %c0_1 = arith.constant 0 : index
    %c0_2 = arith.constant 0 : index
    %3 = vector.load %arg3[%c0, %c0_1, %c0_2] : memref<1x4x128xf32, #tpu.memory_space<vmem>>, vector<1x4x128xf32>
    %4 = vector.shape_cast %3 : vector<1x4x128xf32> to vector<4x128xf32>
    %c0_3 = arith.constant 0 : index
    %c0_4 = arith.constant 0 : index
    %c0_5 = arith.constant 0 : index
    %5 = vector.load %arg4[%c0_3, %c0_4, %c0_5] : memref<1x4x4xf32, #tpu.memory_space<vmem>>, vector<1x4x4xf32>
    %6 = vector.shape_cast %5 : vector<1x4x4xf32> to vector<4x4xf32>
    %cst = arith.constant dense<0.000000e+00> : vector<4x4xf32>
    %7 = tpu.matmul %4, %4, %cst {dimension_numbers = #tpu.dot_dimension_numbers<[1], [1], [0], [0], [0, 0, 1, 0], [], []>} : vector<4x128xf32>, vector<4x128xf32>, vector<4x4xf32> -> vector<4x4xf32>
    %8 = arith.addf %6, %7 : vector<4x4xf32>
    %c0_6 = arith.constant 0 : index
    %c0_7 = arith.constant 0 : index
    %c0_8 = arith.constant 0 : index
    %9 = vector.load %arg4[%c0_6, %c0_7, %c0_8] : memref<1x4x4xf32, #tpu.memory_space<vmem>>, vector<1x4x4xf32>
    %10 = vector.shape_cast %9 : vector<1x4x4xf32> to vector<4x4xf32>
    %11 = vector.shape_cast %8 : vector<4x4xf32> to vector<1x4x4xf32>
    tpu.vector_store %arg4[%c0_6, %c0_7, %c0_8], %11 {strides = array<i32>} : memref<1x4x4xf32, #tpu.memory_space<vmem>>, vector<1x4x4xf32>,
    %c1_i32 = arith.constant 1 : i32
    %12 = arith.cmpi eq, %arg1, %c1_i32 : i32
    %13 = arith.extui %12 : i1 to i32
    %c0_i32_9 = arith.constant 0 : i32
    %14 = arith.cmpi ne, %13, %c0_i32_9 : i32
    scf.if %14 {
      %c0_10 = arith.constant 0 : index
      %c0_11 = arith.constant 0 : index
      %c0_12 = arith.constant 0 : index
      %15 = vector.load %arg4[%c0_10, %c0_11, %c0_12] : memref<1x4x4xf32, #tpu.memory_space<vmem>>, vector<1x4x4xf32>
      %16 = vector.shape_cast %15 : vector<1x4x4xf32> to vector<4x4xf32>
      %cst_13 = arith.constant dense<0x7F800000> : vector<4xf32>
      %17 = vector.multi_reduction <minimumf>, %16, %cst_13 [1] : vector<4x4xf32> to vector<4xf32>
      %18 = vector.shape_cast %17 : vector<4xf32> to vector<4x1xf32>
      %19 = vector.broadcast %18 : vector<4x1xf32> to vector<4x4xf32>
      %20 = arith.subf %19, %16 : vector<4x4xf32>
      %21 = math.exp %20 : vector<4x4xf32>
      %cst_14 = arith.constant dense<0.000000e+00> : vector<4xf32>
      %22 = vector.multi_reduction <add>, %21, %cst_14 [1] : vector<4x4xf32> to vector<4xf32>
      %23 = vector.shape_cast %22 : vector<4xf32> to vector<4x1xf32>
      %24 = vector.broadcast %23 : vector<4x1xf32> to vector<4x4xf32>
      %25 = arith.divf %21, %24 : vector<4x4xf32>
      %c0_15 = arith.constant 0 : index
      %26 = memref.load %arg2[%c0_15] : memref<1xf32, #tpu.memory_space<smem>>
      %27 = vector.broadcast %26 : f32 to vector<4x4xf32>
      %28 = arith.mulf %27, %25 : vector<4x4xf32>
      %c0_16 = arith.constant 0 : index
      %c0_17 = arith.constant 0 : index
      %c0_18 = arith.constant 0 : index
      %29 = vector.load %arg4[%c0_16, %c0_17, %c0_18] : memref<1x4x4xf32, #tpu.memory_space<vmem>>, vector<1x4x4xf32>
      %30 = vector.shape_cast %29 : vector<1x4x4xf32> to vector<4x4xf32>
      %31 = vector.shape_cast %28 : vector<4x4xf32> to vector<1x4x4xf32>
      tpu.vector_store %arg4[%c0_16, %c0_17, %c0_18], %31 {strides = array<i32>} : memref<1x4x4xf32, #tpu.memory_space<vmem>>, vector<1x4x4xf32>,
    } else {
    }
    return
  }
  func.func @transform_0(%arg0: i32, %arg1: i32) -> i32 {
    %c0_i32 = arith.constant 0 : i32
    %c0_i32_0 = arith.constant 0 : i32
    return %c0_i32 : i32
  }
  func.func @transform_1(%arg0: i32, %arg1: i32) -> (i32, i32, i32) {
    %c0_i32 = arith.constant 0 : i32
    %c0_i32_0 = arith.constant 0 : i32
    return %arg0, %c0_i32, %arg1 : i32, i32, i32
  }
  func.func @transform_2(%arg0: i32, %arg1: i32) -> (i32, i32, i32) {
    %c0_i32 = arith.constant 0 : i32
    %c0_i32_0 = arith.constant 0 : i32
    %c0_i32_1 = arith.constant 0 : i32
    return %arg0, %c0_i32, %c0_i32_0 : i32, i32, i32
  }
}

</mosaic_0001>

<llo_original>
// kernel: tpu_custom_call.1
$region0: #{tpu_custom_call.1}
  #allocation0 [shape = 'u32[]', space=smem, size = 0x4, offset = 0x4, fixed_abs, tag = 'smem constant byte address 0x4 - core index']
  #allocation1 [shape = 'u32[144,128]{1,0:T(1,128)}', space=vmem, size = 0x12000, scoped, tag = 'internal scratch']
  #allocation2 [shape = 'f32[1]{0:T(128)S(6)}', space=smem, size = 0x200, scoped, tag = 'scoped memory for tpu_custom_call.1']
  %s0 = inlined_call_operand.<no memory space> [shape: f32[1], index: 0, kind: input, shape index: {}]
  %s1 = inlined_call_operand.hbm [shape: f32[2,4,256], index: 1, kind: input, shape index: {}]
  %s2 = inlined_call_operand.hbm [shape: f32[2,4,4], index: 2, kind: output, shape index: {}]
  %s3 = sld [smem:[#allocation0]]
  $region53: #{tpu_custom_call.1} parent=0
    _
  %s5 = ssub.s32 1, %s3
  %s6 = scalar_select 0, %s5, %s3
  %7 = sst [smem:[#allocation2]] %s0
  $region1: #{tpu_custom_call.1} parent=0
    #allocation3 [shape = 'u8[4096]{0}', space=vmem, size = 0x1000, scoped, tag = 'input window, operand 1']
    #allocation4 [shape = 's32[2]{0}', space=sflag, size = 0x8, scoped, tag = 'scoped memory for tpu_custom_call.1']
    #allocation5 [shape = 's32[2]{0}', space=sflag, size = 0x8, scoped, tag = 'scoped memory for tpu_custom_call.1']
    #allocation6 [shape = 'u8[4096]{0}', space=vmem, size = 0x1000, scoped, tag = 'output window, operand 0']
    %8 = vsyncpa [#allocation4], 0
    %s9 = scalar_lea.sflag [#allocation4], 1
    %10 = vsyncpa %s9, 0
    %11 = vsyncpa [#allocation5], 0
    %s12 = scalar_lea.sflag [#allocation5], 1
    %13 = vsyncpa %s12, 0
    loop: start=0, step=1, limit=6
    $region2: #{tpu_custom_call.1} parent=1 // loop_pre_header
      _
    $region3: #{tpu_custom_call.1} parent=1 // loop_header
      %s15 = sphi 0, %s19
      %p16 = scmp.ge.s32.totalorder %s15, 6
      %s22 = sphi 0, %s34
      %s23 = sphi 0, %s30
      %s24 = sphi 0, %s22
      %s25 = sphi 0, %s23
      %s26 = sphi 0, %s24
      %s27 = sphi 0, %s25
      %s35 = sphi 0, %s35
      %s37 = sphi 0, %s35
      %s38 = sphi 0, %s37
      %s52 = sphi 0, %s38
      %s60 = sphi 0, %s62
      %s63 = sphi 0, %s60
      %s64 = sphi 0, %s63
      %s80 = sphi 0, %s64
      %s86 = sphi 0, %s88
      %s89 = sphi 0, %s86
      %s90 = sphi 0, %s89
      %s106 = sphi 0, %s90
    $region4: #{tpu_custom_call.1} parent=1 // loop_header_branch
      %18 = sbr.rel (%p16) target = $region8
    $region5: #{tpu_custom_call.1} parent=1 // loop_body
      %s20 = ssub.s32 %s15, 1
      %s21 = ssub.s32 %s15, 2
      %s28 = sadd.s32 1, %s23
      %p29 = scmp.ge.s32.totalorder %s28, 2
      %s30 = scalar_select %p29, 0, %s28
      %s31 = sadd.s32 1, %s22
      %s32 = scalar_select %p29, %s31, %s22
      %p33 = scmp.ge.s32.totalorder %s32, 2
      %s34 = scalar_select %p33, 0, %s32
      %s36 = sadd.s32 %s35, 1
      %p39 = scmp.eq.s32.totalorder %s15, 3
      %p40 = scmp.ne.s32.totalorder %s35, %s37
      %p41 = scmp.eq.s32.totalorder %s15, 0
      %p42 = por %p40, %p41
      %p43 = scmp.ne.s32.totalorder %s35, %s37
      %p44 = scmp.eq.s32.totalorder %s20, 3
      %p45 = por %p43, %p44
      %p46 = scmp.ne.s32.totalorder %s37, %s38
      %p47 = scmp.eq.s32.totalorder %s20, 0
      %p48 = por %p46, %p47
      %p49 = scmp.ne.s32.totalorder %s37, %s38
      %p50 = scmp.eq.s32.totalorder %s21, 3
      %p51 = por %p49, %p50
      %p53 = scmp.ne.s32.totalorder %s38, %s52
      %p54 = scmp.eq.s32.totalorder %s21, 0
      %p55 = por %p53, %p54
      %s56 = ssub.s32 %s22, %s34
      %s57 = ssub.s32 %s23, %s30
      %s58 = sor.u32 %s56, %s57
      %p59 = scmp.eq.s32.totalorder %s58, 0
      %s61 = sadd.s32 %s60, 1
      %s62 = scalar_select %p59, %s60, %s61
      %p65 = pneg %p59
      %p66 = scmp.eq.s32.totalorder %s15, 3
      %p67 = por %p65, %p66
      %p68 = scmp.ne.s32.totalorder %s60, %s63
      %p69 = scmp.eq.s32.totalorder %s15, 0
      %p70 = por %p68, %p69
      %p71 = scmp.ne.s32.totalorder %s60, %s63
      %p72 = scmp.eq.s32.totalorder %s20, 3
      %p73 = por %p71, %p72
      %p74 = scmp.ne.s32.totalorder %s63, %s64
      %p75 = scmp.eq.s32.totalorder %s20, 0
      %p76 = por %p74, %p75
      %p77 = scmp.ne.s32.totalorder %s63, %s64
      %p78 = scmp.eq.s32.totalorder %s21, 3
      %p79 = por %p77, %p78
      %p81 = scmp.ne.s32.totalorder %s64, %s80
      %p82 = scmp.eq.s32.totalorder %s21, 0
      %p83 = por %p81, %p82
      %s84 = ssub.s32 %s22, %s34
      %p85 = scmp.eq.s32.totalorder %s84, 0
      %s87 = sadd.s32 %s86, 1
      %s88 = scalar_select %p85, %s86, %s87
      %p91 = pneg %p85
      %p92 = scmp.eq.s32.totalorder %s15, 3
      %p93 = por %p91, %p92
      %p94 = scmp.ne.s32.totalorder %s86, %s89
      %p95 = scmp.eq.s32.totalorder %s15, 0
      %p96 = por %p94, %p95
      %p97 = scmp.ne.s32.totalorder %s86, %s89
      %p98 = scmp.eq.s32.totalorder %s20, 3
      %p99 = por %p97, %p98
      %p100 = scmp.ne.s32.totalorder %s89, %s90
      %p101 = scmp.eq.s32.totalorder %s20, 0
      %p102 = por %p100, %p101
      %p103 = scmp.ne.s32.totalorder %s89, %s90
      %p104 = scmp.eq.s32.totalorder %s21, 3
      %p105 = por %p103, %p104
      %p107 = scmp.ne.s32.totalorder %s90, %s106
      %p108 = scmp.eq.s32.totalorder %s21, 0
      %p109 = por %p107, %p108
      %p110 = scmp.le.s32.totalorder 1, %s15
      %p111 = scmp.lt.s32.totalorder %s15, 5
      %p112 = pnand %p110, %p111
      %p113 = pneg %p112
      // Predicated region
      $region9: #{tpu_custom_call.1} parent=5 // pred_check
        _
      $region10: #{tpu_custom_call.1} parent=5 // pred_check_branch
        %115 = sbr.rel (%p112) target = $region12
      $region11: #{tpu_custom_call.1} parent=5 // pred_region
        %s116 = ssub.s32 %s15, 1
        // Predicated region
        $region13: #{tpu_custom_call.1} parent=11 // pred_check
          %p117 = pneg %p48
        $region14: #{tpu_custom_call.1} parent=11 // pred_check_branch
          %119 = sbr.rel (%p117) target = $region16
        $region15: #{tpu_custom_call.1} parent=11 // pred_region
          _
        $region16: #{tpu_custom_call.1} parent=11 // pred_fallthru
          _
      $region12: #{tpu_custom_call.1} parent=5 // pred_fallthru
        _
      %p120 = scmp.lt.s32.totalorder %s15, 4
      // Predicated region
      $region17: #{tpu_custom_call.1} parent=5 // pred_check
        %p121 = pneg %p120
      $region18: #{tpu_custom_call.1} parent=5 // pred_check_branch
        %123 = sbr.rel (%p121) target = $region20
      $region19: #{tpu_custom_call.1} parent=5 // pred_region
        // Predicated region
        $region21: #{tpu_custom_call.1} parent=19 // pred_check
          %p124 = pneg %p70
        $region22: #{tpu_custom_call.1} parent=19 // pred_check_branch
          %126 = sbr.rel (%p124) target = $region24
        $region23: #{tpu_custom_call.1} parent=19 // pred_region
          %s127 = sand.u32 %s60, 1
          %s128 = scalar_lea.sflag [#allocation4], %s127
          %s129 = sand.u32 %s60, 1
          %s130 = smul.addr %s129, 4
          %s131 = scalar_lea.vmem [#allocation3], %s130
          %s133 = ssub.s32 64, 64
          %134 = vsyncadd %s128, %s133
          %s135 = smul.addr %s22, 2
          %s136 = sadd.s32 %s23, %s135
          %s137 = smul.addr %s136, 64
          %s138 = scalar_lea.hbm %s1, %s137
          %s140 = sshll.u32 %s131, 4
          %s141 = int_to_ptr.vmem [resolvable:$true] %s140
          %143 = dma.hbm_to_vmem [thread:$0]  %s138, 64, %s141, %s128
        $region24: #{tpu_custom_call.1} parent=19 // pred_fallthru
          _
      $region20: #{tpu_custom_call.1} parent=5 // pred_fallthru
        _
      %p144 = scmp.le.s32.totalorder 1, %s15
      %p145 = scmp.lt.s32.totalorder %s15, 5
      %p146 = pnand %p144, %p145
      %p147 = pneg %p146
      // Predicated region
      $region25: #{tpu_custom_call.1} parent=5 // pred_check
        _
      $region26: #{tpu_custom_call.1} parent=5 // pred_check_branch
        %149 = sbr.rel (%p146) target = $region28
      $region27: #{tpu_custom_call.1} parent=5 // pred_region
        %s150 = ssub.s32 %s15, 1
        %s151 = sand.u32 %s63, 1
        %s152 = scalar_lea.sflag [#allocation4], %s151
        %s153 = sand.u32 %s63, 1
        %s154 = smul.addr %s153, 4
        %s155 = scalar_lea.vmem [#allocation3], %s154
        // Predicated region
        $region29: #{tpu_custom_call.1} parent=27 // pred_check
          %p156 = pneg %p76
        $region30: #{tpu_custom_call.1} parent=27 // pred_check_branch
          %158 = sbr.rel (%p156) target = $region32
        $region31: #{tpu_custom_call.1} parent=27 // pred_region
          %159 = dma.done %s152, 64
        $region32: #{tpu_custom_call.1} parent=27 // pred_fallthru
          _
        %p160 = pneg %p48
        %p161 = pneg %p45
        %s162 = sand.u32 %s63, 1
        %s163 = scalar_lea.sflag [#allocation4], %s162
        %s164 = sand.u32 %s63, 1
        %s165 = smul.addr %s164, 4
        %s166 = scalar_lea.vmem [#allocation3], %s165
        %p167 = pneg %p76
        %p168 = pneg %p73
        %p169 = pneg %p102
        %p170 = pneg %p99
        %s171 = sand.u32 %s89, 1
        %s172 = scalar_lea.sflag [#allocation5], %s171
        %s173 = sand.u32 %s89, 1
        %s174 = smul.addr %s173, 4
        %s175 = scalar_lea.vmem [#allocation6], %s174
        %p176 = scmp.eq.s32.totalorder %s25, 0
        // Predicated region
        $region33: #{tpu_custom_call.1} parent=27 // pred_check
          %p177 = pneg %p176
        $region34: #{tpu_custom_call.1} parent=27 // pred_check_branch
          %179 = sbr.rel (%p177) target = $region36
        $region35: #{tpu_custom_call.1} parent=27 // pred_region
          %vm180 = vcmask 27648
          %181 = vst.msk [vmem:[%s175] sm:$0xf] %vm180, 0.0
        $region36: #{tpu_custom_call.1} parent=27 // pred_fallthru
          _
        %v182 = vld [vmem:[%s155] sm:$0xf]
        %v183 = vld [vmem:[%s175] sm:$0xf]
        %184 = vmatprep.subr.mxu0 0.0
        %185 = vmatpush1.xpose.msra.mxu0 0.0
        %186 = vmatprep.subr.mxu0 0.0
        %187 = vmatpush1.xpose.msra.mxu0 0.0
        %188 = vmatprep.subr.mxu0 0.0
        %189 = vmatpush1.xpose.msra.mxu0 0.0
        %190 = vmatprep.subr.mxu0 0.0
        %191 = vmatpush1.xpose.msra.mxu0 0.0
        %192 = vmatprep.subr.mxu0 0.0
        %193 = vmatpush1.xpose.msra.mxu0 0.0
        %194 = vmatprep.subr.mxu0 0.0
        %195 = vmatpush1.xpose.msra.mxu0 0.0
        %196 = vmatprep.subr.mxu0 0.0
        %197 = vmatpush1.xpose.msra.mxu0 0.0
        %198 = vmatprep.subr.mxu0 0.0
        %199 = vmatpush1.xpose.msra.mxu0 0.0
        %200 = vmatprep.subr.mxu0 0.0
        %201 = vmatpush1.xpose.msra.mxu0 0.0
        %202 = vmatprep.subr.mxu0 0.0
        %203 = vmatpush1.xpose.msra.mxu0 0.0
        %204 = vmatprep.subr.mxu0 0.0
        %205 = vmatpush1.xpose.msra.mxu0 0.0
        %206 = vmatprep.subr.mxu0 0.0
        %207 = vmatpush1.xpose.msra.mxu0 0.0
        %208 = vmatprep.subr.mxu0 0.0
        %209 = vmatpush1.xpose.msra.mxu0 0.0
        %210 = vmatprep.subr.mxu0 0.0
        %211 = vmatpush1.xpose.msra.mxu0 0.0
        %212 = vmatprep.subr.mxu0 0.0
        %213 = vmatpush1.xpose.msra.mxu0 0.0
        %214 = vmatprep.subr.mxu0 0.0
        %215 = vmatpush1.xpose.msra.mxu0 %v182
        %216 = vmatprep.subr.mxu0 0.0
        %217 = vmatpush2.xpose.msra.mxu0 0.0
        %218 = vmatprep.subr.mxu0 0.0
        %219 = vmatpush2.xpose.msra.mxu0 0.0
        %220 = vmatprep.subr.mxu0 0.0
        %221 = vmatpush2.xpose.msra.mxu0 0.0
        %222 = vmatprep.subr.mxu0 0.0
        %223 = vmatpush2.xpose.msra.mxu0 0.0
        %224 = vmatprep.subr.mxu0 0.0
        %225 = vmatpush2.xpose.msra.mxu0 0.0
        %226 = vmatprep.subr.mxu0 0.0
        %227 = vmatpush2.xpose.msra.mxu0 0.0
        %228 = vmatprep.subr.mxu0 0.0
        %229 = vmatpush2.xpose.msra.mxu0 0.0
        %230 = vmatprep.subr.mxu0 0.0
        %231 = vmatpush2.xpose.msra.mxu0 0.0
        %232 = vmatprep.subr.mxu0 0.0
        %233 = vmatpush2.xpose.msra.mxu0 0.0
        %234 = vmatprep.subr.mxu0 0.0
        %235 = vmatpush2.xpose.msra.mxu0 0.0
        %236 = vmatprep.subr.mxu0 0.0
        %237 = vmatpush2.xpose.msra.mxu0 0.0
        %238 = vmatprep.subr.mxu0 0.0
        %239 = vmatpush2.xpose.msra.mxu0 0.0
        %240 = vmatprep.subr.mxu0 0.0
        %241 = vmatpush2.xpose.msra.mxu0 0.0
        %242 = vmatprep.subr.mxu0 0.0
        %243 = vmatpush2.xpose.msra.mxu0 0.0
        %244 = vmatprep.subr.mxu0 0.0
        %245 = vmatpush2.xpose.msra.mxu0 0.0
        %246 = vmatprep.subr.mxu0 0.0
        %247 = vmatpush2.xpose.msra.mxu0 0.0
        %248 = vmatprep.mubr.f32.mxu0 0.0
        %249 = vmatmul.mubr.f32.gmra.mxu0 %v182
        %v250 = vpop.f32.mrf.mxu0
        %v251 = vadd.f32 0.0, %v250
        %v252 = vpop.f32.mrf.mxu0
        %253 = vdwg.mxu0
        %v254 = vadd.f32 %v183, %v251
        %vm255 = vcmask 27648
        %256 = vst.msk [vmem:[%s175] sm:$0xf] %vm255, %v254
        %p257 = scmp.eq.s32.totalorder %s25, 1
        // Predicated region
        $region37: #{tpu_custom_call.1} parent=27 // pred_check
          %p258 = pneg %p257
        $region38: #{tpu_custom_call.1} parent=27 // pred_check_branch
          %260 = sbr.rel (%p258) target = $region40
        $region39: #{tpu_custom_call.1} parent=27 // pred_region
          %v261 = vld [vmem:[%s175] sm:$0xf]
          %v262 = vsel %vm255, %v261, inf
          %263 = vmin.xlane.f32.xlu0 %v262
          %v264 = vpop.xlane.xlu0 %263
          %v265 = vsub.f32 %v264, %v261
          %v266 = vmul.f32 %v265, 1.442695
          %v267 = vpow.pop %v266
          %v268 = vsel %vm255, %v267, 0.0
          %269 = vadd.xlane.f32.xlu0 %v268
          %v270 = vpop.xlane.xlu0 %269
          %v271 = vrcp.pop %v270
          %v272 = vmul.f32 %v267, %v271
          %s273 = sld [smem:[#allocation2]]
          %v274 = vstv %s273
          %v275 = vmul.f32 %v274, %v272
          %276 = vst.msk [vmem:[%s175] sm:$0xf] %vm255, %v275
        $region40: #{tpu_custom_call.1} parent=27 // pred_fallthru
          _
        %s277 = sand.u32 %s89, 1
        %s278 = scalar_lea.sflag [#allocation5], %s277
        %s279 = sand.u32 %s89, 1
        %s280 = smul.addr %s279, 4
        %s281 = scalar_lea.vmem [#allocation6], %s280
        // Predicated region
        $region41: #{tpu_custom_call.1} parent=27 // pred_check
          %p282 = pneg %p99
        $region42: #{tpu_custom_call.1} parent=27 // pred_check_branch
          %284 = sbr.rel (%p282) target = $region44
        $region43: #{tpu_custom_call.1} parent=27 // pred_region
          %s286 = ssub.s32 64, 64
          %287 = vsyncadd %s278, %s286
          %s288 = smul.addr %s24, 64
          %s289 = scalar_lea.hbm %s2, %s288
          %s291 = sshll.u32 %s281, 4
          %s292 = int_to_ptr.vmem [resolvable:$true] %s291
          %294 = dma.vmem_to_hbm [thread:$0]  %s292, 64, %s289, %s278
        $region44: #{tpu_custom_call.1} parent=27 // pred_fallthru
          _
      $region28: #{tpu_custom_call.1} parent=5 // pred_fallthru
        _
      %p295 = scmp.le.s32.totalorder 2, %s15
      // Predicated region
      $region45: #{tpu_custom_call.1} parent=5 // pred_check
        %p296 = pneg %p295
      $region46: #{tpu_custom_call.1} parent=5 // pred_check_branch
        %298 = sbr.rel (%p296) target = $region48
      $region47: #{tpu_custom_call.1} parent=5 // pred_region
        %s299 = ssub.s32 %s15, 2
        // Predicated region
        $region49: #{tpu_custom_call.1} parent=47 // pred_check
          %p300 = pneg %p105
        $region50: #{tpu_custom_call.1} parent=47 // pred_check_branch
          %302 = sbr.rel (%p300) target = $region52
        $region51: #{tpu_custom_call.1} parent=47 // pred_region
          %s303 = sand.u32 %s90, 1
          %s304 = scalar_lea.sflag [#allocation5], %s303
          %s305 = sand.u32 %s90, 1
          %s306 = smul.addr %s305, 4
          %s307 = scalar_lea.vmem [#allocation6], %s306
          %308 = dma.done %s304, 64
        $region52: #{tpu_custom_call.1} parent=47 // pred_fallthru
          _
      $region48: #{tpu_custom_call.1} parent=5 // pred_fallthru
        _
    $region6: #{tpu_custom_call.1} parent=1 // loop_footer
      %s19 = sadd.s32 1, %s15
    $region7: #{tpu_custom_call.1} parent=1 // loop_footer_branch
      %14 = sbr.rel target = $region3
    $region8: #{tpu_custom_call.1} parent=1 // loop_exit
      _
    %309 = vsyncpa [#allocation4], 1
    %s310 = scalar_lea.sflag [#allocation4], 1
    %311 = vsyncpa %s310, 1
    %312 = vsyncpa [#allocation5], 1
    %s313 = scalar_lea.sflag [#allocation5], 1
    %314 = vsyncpa %s313, 1

</llo_original>
